<compile_context>
chip_gen: v5e
topology: v5e:2x2
jax: 0.10.0
libtpu: 0.0.40
codegen_flags: <defaults>
</compile_context>

<pallas_src>
import numpy as np
import jax
import jax.numpy as jnp
from jax import lax
from jax.experimental import pallas as pl
from jax.experimental.pallas import tpu as pltpu

_EPS = 1e-5
_TARGET_BLOCK_BYTES = 2 << 20      # ~2 MiB of streamed Xt per grid step


def _vmem_limit_bytes(need: int) -> int:
    """Need-based VMEM request, capped generation-aware (v7x has only 64 MiB)."""
    cap = 64 << 20
    try:
        cap = int(getattr(pltpu.get_tpu_info(), "vmem_capacity_bytes", cap))
    except Exception:
        pass
    return int(min(max(need, 16 << 20), max(16 << 20, cap // 2)))


def _stats_kernel(xt_ref, gram_ref, s_ref):
    """Pass 1: accumulate G = relu(X) @ relu(X)^T and s = sum(relu(X)) per tile.

    xt_ref   : (2*Cin, TILE_M) streamed pixels (bf16 or f32), M on lanes
    gram_ref : (2*Cin, 2*Cin) f32, resident accumulator (per parallel-axis core)
    s_ref    : (2*Cin, 1)     f32, resident accumulator (per parallel-axis core)
    """
    @pl.when(pl.program_id(1) == 0)
    def _():
        gram_ref[...] = jnp.zeros_like(gram_ref)
        s_ref[...] = jnp.zeros_like(s_ref)

    xr = jnp.maximum(xt_ref[...].astype(jnp.float32), 0.0)     # upcast (cheap) + ReLU (VPU)
    # Gram over the pixel axis: MXU contraction over tile_m, no transpose materialized.
    gram_ref[...] += lax.dot_general(
        xr, xr, dimension_numbers=(((1,), (1,)), ((), ())),
        precision=lax.Precision.HIGHEST, preferred_element_type=jnp.float32)
    s_ref[...] += jnp.sum(xr, axis=1, keepdims=True)


def _norm_kernel(xt_ref, wt_ref, shift_ref, o_ref):
    """Pass 2: out = (scale-folded Wt) @ relu(X) + shift  (BatchNorm folded)."""
    xr = jnp.maximum(xt_ref[...].astype(jnp.float32), 0.0)
    y = jnp.dot(wt_ref[...], xr,
                precision=lax.Precision.HIGHEST,
                preferred_element_type=jnp.float32)
    o_ref[...] = (y + shift_ref[...]).astype(o_ref.dtype)


def double_factorized_reduce(x_nchw, w1, w2, gamma, beta, *,
                             stream_dtype=jnp.bfloat16,
                             target_block_bytes=_TARGET_BLOCK_BYTES):
    """x_nchw: (N, C_in, H, W); w1/w2: (C_in, C_out//2); gamma/beta: (C_out,).
    Returns (N, C_out, Ho, Wo) NCHW, matching the PyTorch module (training-mode BN)."""
    N, Cin, H, W = x_nchw.shape
    c_half = w1.shape[1]
    c_out = 2 * c_half
    c2 = 2 * Cin

    # conv_1 grid: rows/cols 0,4,8,...   conv_2 grid (after [1:,1:] crop): 1,5,9,...
    Ho = (H - 1) // 4 + 1
    Wo = (W - 1) // 4 + 1
    assert (H - 2) // 4 + 1 == Ho and (W - 2) // 4 + 1 == Wo, \
        "spatial dims of the two branches must match for torch.cat"
    M = N * Ho * Wo

    in_bytes = jnp.dtype(stream_dtype).itemsize
    out_bytes = jnp.dtype(x_nchw.dtype).itemsize

    # ---- adaptive lane tiling over M: ~target_block_bytes per xt block, even #tiles
    tm0 = max(128, (target_block_bytes // max(c2 * in_bytes, 1)) // 128 * 128)
    n_tiles = max(2, pl.cdiv(M, tm0))        # >=2 -> pass 2 parallel on both v7x TCs
    if n_tiles % 2:
        n_tiles += 1                          # even -> clean 2-way pass-1 core split
    tile_m = pl.cdiv(pl.cdiv(M, n_tiles), 128) * 128
    M_pad = n_tiles * tile_m
    n_half = n_tiles // 2

    # ---- subsample FIRST (only ~1/8 of x moves) and cast to the streaming dtype
    # immediately, so the concat/transpose/pad copies all move the narrow dtype.
    x1 = x_nchw[:, :, 0::4, 0::4].astype(stream_dtype)     # pixels used by conv_1
    x2 = x_nchw[:, :, 1::4, 1::4].astype(stream_dtype)     # pixels used by conv_2
    xt = jnp.concatenate([x1, x2], axis=1)                 # (N, 2*Cin, Ho, Wo)
    xt = jnp.transpose(xt, (1, 0, 2, 3)).reshape(c2, M)
    if M_pad != M:
        xt = jnp.pad(xt, ((0, 0), (0, M_pad - M)))          # zeros: ReLU(0)=0 -> no effect

    # Fused block-diagonal weight (Cout, 2*Cin); tiny, kept in f32 for numerics.
    z = jnp.zeros((c_half, Cin), jnp.float32)
    wt = jnp.concatenate(
        [jnp.concatenate([w1.astype(jnp.float32).T, z], axis=1),
         jnp.concatenate([z, w2.astype(jnp.float32).T], axis=1)], axis=0)

    x_block = c2 * tile_m * in_bytes
    o_block = c_out * tile_m * out_bytes
    vmem_limit = _vmem_limit_bytes(2 * (x_block + o_block) + (2 << 20))

    # ---- Pass 1: per-core partial Gram/sum stats (parallel core axis x arbitrary tiles)
    x_spec1 = pl.BlockSpec((c2, tile_m), lambda p, i: (0, p * n_half + i))
    gram_spec = pl.BlockSpec((None, c2, c2), lambda p, i: (p, 0, 0))
    s_spec = pl.BlockSpec((None, c2, 1), lambda p, i: (p, 0, 0))

    cost1 = pl.CostEstimate(
        flops=2 * c2 * c2 * M_pad + 2 * c2 * M_pad,
        transcendentals=0,
        bytes_accessed=c2 * M_pad * in_bytes + 2 * 2 * c2 * (c2 + 1) * 4)

    gram_p, s_p = pl.pallas_call(
        _stats_kernel,
        out_shape=(jax.ShapeDtypeStruct((2, c2, c2), jnp.float32),
                   jax.ShapeDtypeStruct((2, c2, 1), jnp.float32)),
        grid=(2, n_half),
        in_specs=[x_spec1],
        out_specs=(gram_spec, s_spec),
        compiler_params=pltpu.CompilerParams(
            dimension_semantics=("parallel", "arbitrary"),
            vmem_limit_bytes=vmem_limit),
        cost_estimate=cost1,
    )(xt)

    # Tiny per-channel math in f32: combine partials, derive BN scale/shift, fold scale.
    gram = gram_p[0] + gram_p[1]                     # (2Cin, 2Cin)
    s = (s_p[0] + s_p[1])[:, 0]                      # (2Cin,)
    mean = (wt @ s) / M                              # (Cout,)
    msq = jnp.sum((wt @ gram) * wt, axis=1) / M      # diag(Wt G Wt^T) / M
    var = jnp.maximum(msq - mean * mean, 0.0)        # biased var (training-mode BN)
    scale = gamma.astype(jnp.float32) * lax.rsqrt(var + _EPS)
    shift = (beta.astype(jnp.float32) - mean * scale).reshape(c_out, 1)
    wt_scaled = wt * scale[:, None]                  # BN scale folded into the weight

    # ---- Pass 2: independent tiles -> parallel (megacore on v7x)
    x_spec2 = pl.BlockSpec((c2, tile_m), lambda i: (0, i))
    cost2 = pl.CostEstimate(
        flops=2 * c_out * c2 * M_pad + c_out * M_pad,
        transcendentals=0,
        bytes_accessed=c2 * M_pad * in_bytes + c_out * M_pad * out_bytes)

    out_t = pl.pallas_call(
        _norm_kernel,
        out_shape=jax.ShapeDtypeStruct((c_out, M_pad), x_nchw.dtype),
        grid=(n_tiles,),
        in_specs=[x_spec2,
                  pl.BlockSpec((c_out, c2), lambda i: (0, 0)),
                  pl.BlockSpec((c_out, 1), lambda i: (0, 0))],
        out_specs=pl.BlockSpec((c_out, tile_m), lambda i: (0, i)),
        compiler_params=pltpu.CompilerParams(
            dimension_semantics=("parallel",),
            vmem_limit_bytes=vmem_limit),
        cost_estimate=cost2,
    )(xt, wt_scaled, shift)

    out = out_t[:, :M].reshape(c_out, N, Ho, Wo)
    return jnp.transpose(out, (1, 0, 2, 3))          # back to NCHW


def reference(x_nchw, w1, w2, gamma, beta):
    """Pure-JAX reference mirroring the PyTorch forward (training-mode BN)."""
    x = jnp.maximum(x_nchw, 0.0)
    x1 = x[:, :, 0::4, 0::4]
    x2 = x[:, :, 1:, 1:][:, :, 0::4, 0::4]
    y1 = jnp.einsum('nchw,cd->ndhw', x1, w1, precision=lax.Precision.HIGHEST)
    y2 = jnp.einsum('nchw,cd->ndhw', x2, w2, precision=lax.Precision.HIGHEST)
    y = jnp.concatenate([y1, y2], axis=1)
    mean = y.mean(axis=(0, 2, 3), keepdims=True)
    var = ((y - mean) ** 2).mean(axis=(0, 2, 3), keepdims=True)
    yn = (y - mean) / jnp.sqrt(var + _EPS)
    return yn * gamma.reshape(1, -1, 1, 1) + beta.reshape(1, -1, 1, 1)


if __name__ == "__main__":
    N, C_in, H, W = 2, 4, 16, 16
    C_out = 8

    key = jax.random.PRNGKey(0)
    kx, kw1, kw2 = jax.random.split(key, 3)
    x = jax.random.normal(kx, (N, C_in, H, W), dtype=jnp.float32)
    fan = 1.0 / np.sqrt(C_in)
    w1 = jax.random.normal(kw1, (C_in, C_out // 2), dtype=jnp.float32) * fan
    w2 = jax.random.normal(kw2, (C_in, C_out // 2), dtype=jnp.float32) * fan
    gamma = jnp.ones((C_out,), dtype=jnp.float32)     # BatchNorm2d default init
    beta = jnp.zeros((C_out,), dtype=jnp.float32)

    ref = jax.block_until_ready(reference(x, w1, w2, gamma, beta))

    # Exact-math path (f32 streaming) -> tight tolerance.
    out_f32 = jax.block_until_ready(
        double_factorized_reduce(x, w1, w2, gamma, beta, stream_dtype=jnp.float32))
    assert out_f32.shape == (N, C_out, 4, 4), out_f32.shape
    np.testing.assert_allclose(np.asarray(out_f32), np.asarray(ref),
                               rtol=2e-3, atol=2e-3)

    # Default fast path (bf16 HBM streaming, f32 accumulation) -> looser tolerance.
    out_bf16 = jax.block_until_ready(
        double_factorized_reduce(x, w1, w2, gamma, beta))
    assert out_bf16.shape == (N, C_out, 4, 4), out_bf16.shape
    np.testing.assert_allclose(np.asarray(out_bf16), np.asarray(ref),
                               rtol=3e-2, atol=3e-2)

    print("KERNEL_OK")
</pallas_src>

<mosaic_0001>
module attributes {stable_mosaic.version = 11 : i64} {
  func.func @_stats_kernel(%arg0: i32, %arg1: i32, %arg2: memref<8x128xf32, #tpu.memory_space<vmem>>, %arg3: memref<1x8x8xf32, #tpu.memory_space<vmem>>, %arg4: memref<1x8x1xf32, #tpu.memory_space<vmem>>) attributes {dimension_semantics = [#tpu.dimension_semantics<parallel>, #tpu.dimension_semantics<arbitrary>], iteration_bounds = array<i64: 2, 1>, scalar_prefetch = 0 : i64, scratch_operands = 0 : i64, tpu.core_type = #tpu.core_type<tc>, window_params = [{transform_indices = @transform_0, window_bounds = array<i64: 8, 128>}, {transform_indices = @transform_1, window_bounds = array<i64: 1, 8, 8>}, {transform_indices = @transform_2, window_bounds = array<i64: 1, 8, 1>}]} {
    %c0_i32 = arith.constant 0 : i32
    %0 = arith.cmpi eq, %arg1, %c0_i32 : i32
    %1 = arith.extui %0 : i1 to i32
    %c0_i32_0 = arith.constant 0 : i32
    %2 = arith.cmpi ne, %1, %c0_i32_0 : i32
    scf.if %2 {
      %cst_16 = arith.constant 0.000000e+00 : f32
      %21 = vector.broadcast %cst_16 : f32 to vector<8x8xf32>
      %c0_17 = arith.constant 0 : index
      %c0_18 = arith.constant 0 : index
      %c0_19 = arith.constant 0 : index
      %22 = vector.load %arg3[%c0_17, %c0_18, %c0_19] : memref<1x8x8xf32, #tpu.memory_space<vmem>>, vector<1x8x8xf32>
      %23 = vector.shape_cast %22 : vector<1x8x8xf32> to vector<8x8xf32>
      %24 = vector.shape_cast %21 : vector<8x8xf32> to vector<1x8x8xf32>
      tpu.vector_store %arg3[%c0_17, %c0_18, %c0_19], %24 {strides = array<i32>} : memref<1x8x8xf32, #tpu.memory_space<vmem>>, vector<1x8x8xf32>,
      %cst_20 = arith.constant 0.000000e+00 : f32
      %25 = vector.broadcast %cst_20 : f32 to vector<8x1xf32>
      %c0_21 = arith.constant 0 : index
      %c0_22 = arith.constant 0 : index
      %c0_23 = arith.constant 0 : index
      %26 = vector.load %arg4[%c0_21, %c0_22, %c0_23] : memref<1x8x1xf32, #tpu.memory_space<vmem>>, vector<1x8x1xf32>
      %27 = vector.shape_cast %26 : vector<1x8x1xf32> to vector<8x1xf32>
      %28 = vector.shape_cast %25 : vector<8x1xf32> to vector<1x8x1xf32>
      tpu.vector_store %arg4[%c0_21, %c0_22, %c0_23], %28 {strides = array<i32>} : memref<1x8x1xf32, #tpu.memory_space<vmem>>, vector<1x8x1xf32>,
    } else {
    }
    %c0 = arith.constant 0 : index
    %c0_1 = arith.constant 0 : index
    %3 = vector.load %arg2[%c0, %c0_1] : memref<8x128xf32, #tpu.memory_space<vmem>>, vector<8x128xf32>
    %cst = arith.constant 0.000000e+00 : f32
    %4 = vector.broadcast %cst : f32 to vector<8x128xf32>
    %5 = arith.maximumf %3, %4 : vector<8x128xf32>
    %c0_2 = arith.constant 0 : index
    %c0_3 = arith.constant 0 : index
    %c0_4 = arith.constant 0 : index
    %6 = vector.load %arg3[%c0_2, %c0_3, %c0_4] : memref<1x8x8xf32, #tpu.memory_space<vmem>>, vector<1x8x8xf32>
    %7 = vector.shape_cast %6 : vector<1x8x8xf32> to vector<8x8xf32>
    %cst_5 = arith.constant dense<0.000000e+00> : vector<8x8xf32>
    %8 = tpu.matmul %5, %5, %cst_5 {dimension_numbers = #tpu.dot_dimension_numbers<[1], [1], [0], [0], [0, 0, 1, 0], [], []>, precision = #tpu.contract_precision<fp32>} : vector<8x128xf32>, vector<8x128xf32>, vector<8x8xf32> -> vector<8x8xf32>
    %9 = arith.addf %7, %8 : vector<8x8xf32>
    %c0_6 = arith.constant 0 : index
    %c0_7 = arith.constant 0 : index
    %c0_8 = arith.constant 0 : index
    %10 = vector.load %arg3[%c0_6, %c0_7, %c0_8] : memref<1x8x8xf32, #tpu.memory_space<vmem>>, vector<1x8x8xf32>
    %11 = vector.shape_cast %10 : vector<1x8x8xf32> to vector<8x8xf32>
    %12 = vector.shape_cast %9 : vector<8x8xf32> to vector<1x8x8xf32>
    tpu.vector_store %arg3[%c0_6, %c0_7, %c0_8], %12 {strides = array<i32>} : memref<1x8x8xf32, #tpu.memory_space<vmem>>, vector<1x8x8xf32>,
    %c0_9 = arith.constant 0 : index
    %c0_10 = arith.constant 0 : index
    %c0_11 = arith.constant 0 : index
    %13 = vector.load %arg4[%c0_9, %c0_10, %c0_11] : memref<1x8x1xf32, #tpu.memory_space<vmem>>, vector<1x8x1xf32>
    %14 = vector.shape_cast %13 : vector<1x8x1xf32> to vector<8x1xf32>
    %cst_12 = arith.constant dense<0.000000e+00> : vector<8xf32>
    %15 = vector.multi_reduction <add>, %5, %cst_12 [1] : vector<8x128xf32> to vector<8xf32>
    %16 = vector.shape_cast %15 : vector<8xf32> to vector<8x1xf32>
    %17 = arith.addf %14, %16 : vector<8x1xf32>
    %c0_13 = arith.constant 0 : index
    %c0_14 = arith.constant 0 : index
    %c0_15 = arith.constant 0 : index
    %18 = vector.load %arg4[%c0_13, %c0_14, %c0_15] : memref<1x8x1xf32, #tpu.memory_space<vmem>>, vector<1x8x1xf32>
    %19 = vector.shape_cast %18 : vector<1x8x1xf32> to vector<8x1xf32>
    %20 = vector.shape_cast %17 : vector<8x1xf32> to vector<1x8x1xf32>
    tpu.vector_store %arg4[%c0_13, %c0_14, %c0_15], %20 {strides = array<i32>} : memref<1x8x1xf32, #tpu.memory_space<vmem>>, vector<1x8x1xf32>,
    return
  }
  func.func @transform_0(%arg0: i32, %arg1: i32) -> (i32, i32) {
    %c1_i32 = arith.constant 1 : i32
    %0 = arith.muli %arg0, %c1_i32 : i32
    %1 = arith.addi %0, %arg1 : i32
    %c0_i32 = arith.constant 0 : i32
    %c0_i32_0 = arith.constant 0 : i32
    return %c0_i32, %1 : i32, i32
  }
  func.func @transform_1(%arg0: i32, %arg1: i32) -> (i32, i32, i32) {
    %c0_i32 = arith.constant 0 : i32
    %c0_i32_0 = arith.constant 0 : i32
    %c0_i32_1 = arith.constant 0 : i32
    return %arg0, %c0_i32, %c0_i32_0 : i32, i32, i32
  }
  func.func @transform_2(%arg0: i32, %arg1: i32) -> (i32, i32, i32) {
    %c0_i32 = arith.constant 0 : i32
    %c0_i32_0 = arith.constant 0 : i32
    %c0_i32_1 = arith.constant 0 : i32
    return %arg0, %c0_i32, %c0_i32_0 : i32, i32, i32
  }
}

</mosaic_0001>

<llo_original>
// kernel: tpu_custom_call.1
$region0: #{tpu_custom_call.1}
  #allocation0 [shape = 'u32[]', space=smem, size = 0x4, offset = 0x4, fixed_abs, tag = 'smem constant byte address 0x4 - core index']
  #allocation1 [shape = 'u32[72,128]{1,0:T(1,128)}', space=vmem, size = 0x9000, scoped, tag = 'internal scratch']
  %s0 = inlined_call_operand.hbm [shape: f32[8,256], index: 0, kind: input, shape index: {}]
  %s1 = inlined_call_operand.hbm [shape: f32[2,8,8], index: 1, kind: output, shape index: {0}]
  %s2 = inlined_call_operand.vmem [shape: f32[2,8,1], index: 2, kind: output, shape index: {1}]
  %3 = xla_tuple %s1, %s2
  %s4 = sld [smem:[#allocation0]]
  $region53: #{tpu_custom_call.1} parent=0
    _
  %s6 = ssub.s32 1, %s4
  %s7 = scalar_select 0, %s6, %s4
  $region1: #{tpu_custom_call.1} parent=0
    #allocation2 [shape = 'u8[8192]{0}', space=vmem, size = 0x2000, scoped, tag = 'input window, operand 0']
    #allocation3 [shape = 's32[2]{0}', space=sflag, size = 0x8, scoped, tag = 'scoped memory for tpu_custom_call.1']
    #allocation4 [shape = 's32[2]{0}', space=sflag, size = 0x8, scoped, tag = 'scoped memory for tpu_custom_call.1']
    #allocation5 [shape = 'u8[8192]{0}', space=vmem, size = 0x2000, scoped, tag = 'output window, operand 0']
    %8 = vsyncpa [#allocation3], 0
    %s9 = scalar_lea.sflag [#allocation3], 1
    %10 = vsyncpa %s9, 0
    %11 = vsyncpa [#allocation4], 0
    %s12 = scalar_lea.sflag [#allocation4], 1
    %13 = vsyncpa %s12, 0
    loop: start=0, step=1, limit=4
    $region2: #{tpu_custom_call.1} parent=1 // loop_pre_header
      _
    $region3: #{tpu_custom_call.1} parent=1 // loop_header
      %s15 = sphi 0, %s19
      %p16 = scmp.ge.s32.totalorder %s15, 4
      %s22 = sphi 0, %s34
      %s23 = sphi 0, %s30
      %s24 = sphi 0, %s22
      %s25 = sphi 0, %s23
      %s26 = sphi 0, %s24
      %s27 = sphi 0, %s25
      %s39 = sphi 0, %s41
      %s42 = sphi 0, %s39
      %s43 = sphi 0, %s42
      %s59 = sphi 0, %s43
      %s65 = sphi 0, %s67
      %s68 = sphi 0, %s65
      %s69 = sphi 0, %s68
      %s85 = sphi 0, %s69
      %s91 = sphi 0, %s93
      %s94 = sphi 0, %s91
      %s95 = sphi 0, %s94
      %s111 = sphi 0, %s95
    $region4: #{tpu_custom_call.1} parent=1 // loop_header_branch
      %18 = sbr.rel (%p16) target = $region8
    $region5: #{tpu_custom_call.1} parent=1 // loop_body
      %s20 = ssub.s32 %s15, 1
      %s21 = ssub.s32 %s15, 2
      %s28 = sadd.s32 1, %s23
      %p29 = scmp.ge.s32.totalorder %s28, 1
      %s30 = scalar_select %p29, 0, %s28
      %s31 = sadd.s32 1, %s22
      %s32 = scalar_select %p29, %s31, %s22
      %p33 = scmp.ge.s32.totalorder %s32, 2
      %s34 = scalar_select %p33, 0, %s32
      %s35 = sadd.s32 %s22, %s23
      %s36 = sadd.s32 %s34, %s30
      %s37 = ssub.s32 %s35, %s36
      %p38 = scmp.eq.s32.totalorder %s37, 0
      %s40 = sadd.s32 %s39, 1
      %s41 = scalar_select %p38, %s39, %s40
      %p44 = pneg %p38
      %p45 = scmp.eq.s32.totalorder %s15, 1
      %p46 = por %p44, %p45
      %p47 = scmp.ne.s32.totalorder %s39, %s42
      %p48 = scmp.eq.s32.totalorder %s15, 0
      %p49 = por %p47, %p48
      %p50 = scmp.ne.s32.totalorder %s39, %s42
      %p51 = scmp.eq.s32.totalorder %s20, 1
      %p52 = por %p50, %p51
      %p53 = scmp.ne.s32.totalorder %s42, %s43
      %p54 = scmp.eq.s32.totalorder %s20, 0
      %p55 = por %p53, %p54
      %p56 = scmp.ne.s32.totalorder %s42, %s43
      %p57 = scmp.eq.s32.totalorder %s21, 1
      %p58 = por %p56, %p57
      %p60 = scmp.ne.s32.totalorder %s43, %s59
      %p61 = scmp.eq.s32.totalorder %s21, 0
      %p62 = por %p60, %p61
      %s63 = ssub.s32 %s22, %s34
      %p64 = scmp.eq.s32.totalorder %s63, 0
      %s66 = sadd.s32 %s65, 1
      %s67 = scalar_select %p64, %s65, %s66
      %p70 = pneg %p64
      %p71 = scmp.eq.s32.totalorder %s15, 1
      %p72 = por %p70, %p71
      %p73 = scmp.ne.s32.totalorder %s65, %s68
      %p74 = scmp.eq.s32.totalorder %s15, 0
      %p75 = por %p73, %p74
      %p76 = scmp.ne.s32.totalorder %s65, %s68
      %p77 = scmp.eq.s32.totalorder %s20, 1
      %p78 = por %p76, %p77
      %p79 = scmp.ne.s32.totalorder %s68, %s69
      %p80 = scmp.eq.s32.totalorder %s20, 0
      %p81 = por %p79, %p80
      %p82 = scmp.ne.s32.totalorder %s68, %s69
      %p83 = scmp.eq.s32.totalorder %s21, 1
      %p84 = por %p82, %p83
      %p86 = scmp.ne.s32.totalorder %s69, %s85
      %p87 = scmp.eq.s32.totalorder %s21, 0
      %p88 = por %p86, %p87
      %s89 = ssub.s32 %s22, %s34
      %p90 = scmp.eq.s32.totalorder %s89, 0
      %s92 = sadd.s32 %s91, 1
      %s93 = scalar_select %p90, %s91, %s92
      %p96 = pneg %p90
      %p97 = scmp.eq.s32.totalorder %s15, 1
      %p98 = por %p96, %p97
      %p99 = scmp.ne.s32.totalorder %s91, %s94
      %p100 = scmp.eq.s32.totalorder %s15, 0
      %p101 = por %p99, %p100
      %p102 = scmp.ne.s32.totalorder %s91, %s94
      %p103 = scmp.eq.s32.totalorder %s20, 1
      %p104 = por %p102, %p103
      %p105 = scmp.ne.s32.totalorder %s94, %s95
      %p106 = scmp.eq.s32.totalorder %s20, 0
      %p107 = por %p105, %p106
      %p108 = scmp.ne.s32.totalorder %s94, %s95
      %p109 = scmp.eq.s32.totalorder %s21, 1
      %p110 = por %p108, %p109
      %p112 = scmp.ne.s32.totalorder %s95, %s111
      %p113 = scmp.eq.s32.totalorder %s21, 0
      %p114 = por %p112, %p113
      %p115 = scmp.le.s32.totalorder 1, %s15
      %p116 = scmp.lt.s32.totalorder %s15, 3
      %p117 = pnand %p115, %p116
      %p118 = pneg %p117
      // Predicated region
      $region9: #{tpu_custom_call.1} parent=5 // pred_check
        _
      $region10: #{tpu_custom_call.1} parent=5 // pred_check_branch
        %120 = sbr.rel (%p117) target = $region12
      $region11: #{tpu_custom_call.1} parent=5 // pred_region
        %s121 = ssub.s32 %s15, 1
      $region12: #{tpu_custom_call.1} parent=5 // pred_fallthru
        _
      %p122 = scmp.lt.s32.totalorder %s15, 2
      // Predicated region
      $region13: #{tpu_custom_call.1} parent=5 // pred_check
        %p123 = pneg %p122
      $region14: #{tpu_custom_call.1} parent=5 // pred_check_branch
        %125 = sbr.rel (%p123) target = $region16
      $region15: #{tpu_custom_call.1} parent=5 // pred_region
        // Predicated region
        $region17: #{tpu_custom_call.1} parent=15 // pred_check
          %p126 = pneg %p49
        $region18: #{tpu_custom_call.1} parent=15 // pred_check_branch
          %128 = sbr.rel (%p126) target = $region20
        $region19: #{tpu_custom_call.1} parent=15 // pred_region
          %s129 = sand.u32 %s39, 1
          %s130 = scalar_lea.sflag [#allocation3], %s129
          %s131 = sand.u32 %s39, 1
          %s132 = smul.addr %s131, 8
          %s133 = scalar_lea.vmem [#allocation2], %s132
          %s134 = sadd.s32 %s22, %s23
          %136 = vsyncadd %s130, 0
          %s137 = smul.addr %s134, 8
          %s138 = scalar_lea.hbm %s0, %s137
          %s140 = sshll.u32 %s138, 4
          %s141 = int_to_ptr.hbm [resolvable:$true] %s140
          %s142 = sshll.u32 %s133, 4
          %s143 = int_to_ptr.vmem [resolvable:$true] %s142
          %145 = dma.hbm_to_vmem [thread:$0]  %s141, 128, %s143, %s130
        $region20: #{tpu_custom_call.1} parent=15 // pred_fallthru
          _
      $region16: #{tpu_custom_call.1} parent=5 // pred_fallthru
        _
      %p146 = scmp.le.s32.totalorder 1, %s15
      %p147 = scmp.lt.s32.totalorder %s15, 3
      %p148 = pnand %p146, %p147
      %p149 = pneg %p148
      // Predicated region
      $region21: #{tpu_custom_call.1} parent=5 // pred_check
        _
      $region22: #{tpu_custom_call.1} parent=5 // pred_check_branch
        %151 = sbr.rel (%p148) target = $region24
      $region23: #{tpu_custom_call.1} parent=5 // pred_region
        %s152 = ssub.s32 %s15, 1
        %s153 = sand.u32 %s42, 1
        %s154 = scalar_lea.sflag [#allocation3], %s153
        %s155 = sand.u32 %s42, 1
        %s156 = smul.addr %s155, 8
        %s157 = scalar_lea.vmem [#allocation2], %s156
        // Predicated region
        $region25: #{tpu_custom_call.1} parent=23 // pred_check
          %p158 = pneg %p55
        $region26: #{tpu_custom_call.1} parent=23 // pred_check_branch
          %160 = sbr.rel (%p158) target = $region28
        $region27: #{tpu_custom_call.1} parent=23 // pred_region
          %162 = dma.done %s154, 128
        $region28: #{tpu_custom_call.1} parent=23 // pred_fallthru
          _
        %s163 = sand.u32 %s42, 1
        %s164 = scalar_lea.sflag [#allocation3], %s163
        %s165 = sand.u32 %s42, 1
        %s166 = smul.addr %s165, 8
        %s167 = scalar_lea.vmem [#allocation2], %s166
        %p168 = pneg %p55
        %p169 = pneg %p52
        %p170 = pneg %p81
        %p171 = pneg %p78
        %s172 = sand.u32 %s68, 1
        %s173 = scalar_lea.sflag [#allocation4], %s172
        %s174 = sand.u32 %s68, 1
        %s175 = smul.addr %s174, 8
        %s176 = scalar_lea.vmem [#allocation5], %s175
        %p177 = pneg %p107
        %p178 = pneg %p104
        %p179 = scmp.lt.s32.totalorder %s24, 1
        %s180 = scalar_select %p179, %s24, 1
        %s181 = smul.addr %s180, 8
        %s182 = scalar_lea.vmem %s2, %s181
        %s183 = sadd.s32 %s24, %s25
        %p184 = scmp.lt.s32.totalorder %s24, 1
        %s185 = scalar_select %p184, %s24, 1
        %s186 = smul.addr %s185, 8
        %s187 = scalar_lea.vmem %s2, %s186
        %p188 = scmp.eq.s32.totalorder %s25, 0
        // Predicated region
        $region29: #{tpu_custom_call.1} parent=23 // pred_check
          %p189 = pneg %p188
        $region30: #{tpu_custom_call.1} parent=23 // pred_check_branch
          %191 = sbr.rel (%p189) target = $region32
        $region31: #{tpu_custom_call.1} parent=23 // pred_region
          %vm192 = vcmask 64512
          %193 = vst.msk [vmem:[%s176] sm:$0xff] %vm192, 0.0
          %vm194 = vcmask 7168
          %195 = vst.msk [vmem:[%s187] sm:$0xff] %vm194, 0.0
        $region32: #{tpu_custom_call.1} parent=23 // pred_fallthru
          _
        %v196 = vld [vmem:[%s157] sm:$0xff]
        %v197 = vmax.f32 %v196, 0.0
        %v198 = vld [vmem:[%s176] sm:$0xff]
        %199 = vmatpush.xpose.msra.mxu0 0.0
        %200 = vmatpush.xpose.msra.mxu0 0.0
        %201 = vmatpush.xpose.msra.mxu0 0.0
        %202 = vmatpush.xpose.msra.mxu0 0.0
        %203 = vmatpush.xpose.msra.mxu0 0.0
        %204 = vmatpush.xpose.msra.mxu0 0.0
        %205 = vmatpush.xpose.msra.mxu0 0.0
        %206 = vmatpush.xpose.msra.mxu0 0.0
        %207 = vmatpush.xpose.msra.mxu0 0.0
        %208 = vmatpush.xpose.msra.mxu0 0.0
        %209 = vmatpush.xpose.msra.mxu0 0.0
        %210 = vmatpush.xpose.msra.mxu0 0.0
        %211 = vmatpush.xpose.msra.mxu0 0.0
        %212 = vmatpush.xpose.msra.mxu0 0.0
        %213 = vmatpush.xpose.msra.mxu0 0.0
        %v214 = vand.u32 %v197, 4294901760
        %215 = vmatpush.xpose.msra.mxu0 %v214
        %v216 = vand.u32 %v197, 4294901760
        %v217 = vsub.f32 %v197, %v216
        %v218 = vand.u32 %v217, 4294901760
        %v219 = vsub.f32 %v217, %v218
        %v220 = vand.u32 %v219, 4294901760
        %221 = vmatmul.f32.gmra.mxu0 %v220
        %v222 = vpop.f32.mrf.mxu0
        %v223 = vadd.f32 0.0, %v222
        %224 = vdwg.mxu0
        %225 = vmatpush.xpose.msra.mxu0 0.0
        %226 = vmatpush.xpose.msra.mxu0 0.0
        %227 = vmatpush.xpose.msra.mxu0 0.0
        %228 = vmatpush.xpose.msra.mxu0 0.0
        %229 = vmatpush.xpose.msra.mxu0 0.0
        %230 = vmatpush.xpose.msra.mxu0 0.0
        %231 = vmatpush.xpose.msra.mxu0 0.0
        %232 = vmatpush.xpose.msra.mxu0 0.0
        %233 = vmatpush.xpose.msra.mxu0 0.0
        %234 = vmatpush.xpose.msra.mxu0 0.0
        %235 = vmatpush.xpose.msra.mxu0 0.0
        %236 = vmatpush.xpose.msra.mxu0 0.0
        %237 = vmatpush.xpose.msra.mxu0 0.0
        %238 = vmatpush.xpose.msra.mxu0 0.0
        %239 = vmatpush.xpose.msra.mxu0 0.0
        %v240 = vand.u32 %v197, 4294901760
        %v241 = vsub.f32 %v197, %v240
        %v242 = vand.u32 %v241, 4294901760
        %v243 = vsub.f32 %v241, %v242
        %v244 = vand.u32 %v243, 4294901760
        %245 = vmatpush.xpose.msra.mxu0 %v244
        %v246 = vand.u32 %v197, 4294901760
        %247 = vmatmul.f32.gmra.mxu0 %v246
        %v248 = vpop.f32.mrf.mxu0
        %v249 = vadd.f32 %v223, %v248
        %250 = vdwg.mxu0
        %251 = vmatpush.xpose.msra.mxu0 0.0
        %252 = vmatpush.xpose.msra.mxu0 0.0
        %253 = vmatpush.xpose.msra.mxu0 0.0
        %254 = vmatpush.xpose.msra.mxu0 0.0
        %255 = vmatpush.xpose.msra.mxu0 0.0
        %256 = vmatpush.xpose.msra.mxu0 0.0
        %257 = vmatpush.xpose.msra.mxu0 0.0
        %258 = vmatpush.xpose.msra.mxu0 0.0
        %259 = vmatpush.xpose.msra.mxu0 0.0
        %260 = vmatpush.xpose.msra.mxu0 0.0
        %261 = vmatpush.xpose.msra.mxu0 0.0
        %262 = vmatpush.xpose.msra.mxu0 0.0
        %263 = vmatpush.xpose.msra.mxu0 0.0
        %264 = vmatpush.xpose.msra.mxu0 0.0
        %265 = vmatpush.xpose.msra.mxu0 0.0
        %v266 = vand.u32 %v197, 4294901760
        %v267 = vsub.f32 %v197, %v266
        %268 = vmatpush.xpose.msra.mxu0 %v267
        %v269 = vand.u32 %v197, 4294901760
        %v270 = vsub.f32 %v197, %v269
        %271 = vmatmul.f32.gmra.mxu0 %v270
        %v272 = vpop.f32.mrf.mxu0
        %v273 = vadd.f32 %v249, %v272
        %274 = vdwg.mxu0
        %275 = vmatpush.xpose.msra.mxu0 0.0
        %276 = vmatpush.xpose.msra.mxu0 0.0
        %277 = vmatpush.xpose.msra.mxu0 0.0
        %278 = vmatpush.xpose.msra.mxu0 0.0
        %279 = vmatpush.xpose.msra.mxu0 0.0
        %280 = vmatpush.xpose.msra.mxu0 0.0
        %281 = vmatpush.xpose.msra.mxu0 0.0
        %282 = vmatpush.xpose.msra.mxu0 0.0
        %283 = vmatpush.xpose.msra.mxu0 0.0
        %284 = vmatpush.xpose.msra.mxu0 0.0
        %285 = vmatpush.xpose.msra.mxu0 0.0
        %286 = vmatpush.xpose.msra.mxu0 0.0
        %287 = vmatpush.xpose.msra.mxu0 0.0
        %288 = vmatpush.xpose.msra.mxu0 0.0
        %289 = vmatpush.xpose.msra.mxu0 0.0
        %v290 = vand.u32 %v197, 4294901760
        %291 = vmatpush.xpose.msra.mxu0 %v290
        %v292 = vand.u32 %v197, 4294901760
        %v293 = vsub.f32 %v197, %v292
        %v294 = vand.u32 %v293, 4294901760
        %295 = vmatmul.f32.gmra.mxu0 %v294
        %v296 = vpop.f32.mrf.mxu0
        %v297 = vadd.f32 %v273, %v296
        %298 = vdwg.mxu0
        %299 = vmatpush.xpose.msra.mxu0 0.0
        %300 = vmatpush.xpose.msra.mxu0 0.0
        %301 = vmatpush.xpose.msra.mxu0 0.0
        %302 = vmatpush.xpose.msra.mxu0 0.0
        %303 = vmatpush.xpose.msra.mxu0 0.0
        %304 = vmatpush.xpose.msra.mxu0 0.0
        %305 = vmatpush.xpose.msra.mxu0 0.0
        %306 = vmatpush.xpose.msra.mxu0 0.0
        %307 = vmatpush.xpose.msra.mxu0 0.0
        %308 = vmatpush.xpose.msra.mxu0 0.0
        %309 = vmatpush.xpose.msra.mxu0 0.0
        %310 = vmatpush.xpose.msra.mxu0 0.0
        %311 = vmatpush.xpose.msra.mxu0 0.0
        %312 = vmatpush.xpose.msra.mxu0 0.0
        %313 = vmatpush.xpose.msra.mxu0 0.0
        %v314 = vand.u32 %v197, 4294901760
        %v315 = vsub.f32 %v197, %v314
        %v316 = vand.u32 %v315, 4294901760
        %317 = vmatpush.xpose.msra.mxu0 %v316
        %v318 = vand.u32 %v197, 4294901760
        %319 = vmatmul.f32.gmra.mxu0 %v318
        %v320 = vpop.f32.mrf.mxu0
        %v321 = vadd.f32 %v297, %v320
        %322 = vdwg.mxu0
        %323 = vmatpush.xpose.msra.mxu0 0.0
        %324 = vmatpush.xpose.msra.mxu0 0.0
        %325 = vmatpush.xpose.msra.mxu0 0.0
        %326 = vmatpush.xpose.msra.mxu0 0.0
        %327 = vmatpush.xpose.msra.mxu0 0.0
        %328 = vmatpush.xpose.msra.mxu0 0.0
        %329 = vmatpush.xpose.msra.mxu0 0.0
        %330 = vmatpush.xpose.msra.mxu0 0.0
        %331 = vmatpush.xpose.msra.mxu0 0.0
        %332 = vmatpush.xpose.msra.mxu0 0.0
        %333 = vmatpush.xpose.msra.mxu0 0.0
        %334 = vmatpush.xpose.msra.mxu0 0.0
        %335 = vmatpush.xpose.msra.mxu0 0.0
        %336 = vmatpush.xpose.msra.mxu0 0.0
        %337 = vmatpush.xpose.msra.mxu0 0.0
        %v338 = vand.u32 %v197, 4294901760
        %339 = vmatpush.xpose.msra.mxu0 %v338
        %v340 = vand.u32 %v197, 4294901760
        %341 = vmatmul.f32.gmra.mxu0 %v340
        %v342 = vpop.f32.mrf.mxu0
        %v343 = vadd.f32 %v321, %v342
        %344 = vdwg.mxu0
        %v345 = vadd.f32 %v198, %v343
        %vm346 = vcmask 64512
        %347 = vst.msk [vmem:[%s176] sm:$0xff] %vm346, %v345
        %v348 = vld [vmem:[%s187] sm:$0xff]
        %349 = vadd.xlane.f32.xlu0 %v197
        %v350 = vpop.xlane.xlu0 %349
        %v351 = vadd.f32 %v348, %v350
        %vm352 = vcmask 7168
        %353 = vst.msk [vmem:[%s187] sm:$0xff] %vm352, %v351
        %s354 = sand.u32 %s68, 1
        %s355 = scalar_lea.sflag [#allocation4], %s354
        %s356 = sand.u32 %s68, 1
        %s357 = smul.addr %s356, 8
        %s358 = scalar_lea.vmem [#allocation5], %s357
        %p359 = scmp.lt.s32.totalorder %s24, 1
        %s360 = scalar_select %p359, %s24, 1
        %s361 = smul.addr %s360, 8
        %s362 = scalar_lea.vmem %s2, %s361
        // Predicated region
        $region33: #{tpu_custom_call.1} parent=23 // pred_check
          %p363 = pneg %p78
        $region34: #{tpu_custom_call.1} parent=23 // pred_check_branch
          %365 = sbr.rel (%p363) target = $region36
        $region35: #{tpu_custom_call.1} parent=23 // pred_region
          %367 = vsyncadd %s355, 0
          %s368 = smul.addr %s24, 8
          %s369 = scalar_lea.hbm %s1, %s368
          %s371 = sshll.u32 %s358, 4
          %s372 = int_to_ptr.vmem [resolvable:$true] %s371
          %s373 = sshll.u32 %s369, 4
          %s374 = int_to_ptr.hbm [resolvable:$true] %s373
          %376 = dma.vmem_to_hbm [thread:$0]  %s372, 128, %s374, %s355
        $region36: #{tpu_custom_call.1} parent=23 // pred_fallthru
          _
        // Predicated region
        $region37: #{tpu_custom_call.1} parent=23 // pred_check
          %p377 = pneg %p104
        $region38: #{tpu_custom_call.1} parent=23 // pred_check_branch
          %379 = sbr.rel (%p377) target = $region40
        $region39: #{tpu_custom_call.1} parent=23 // pred_region
          _
        $region40: #{tpu_custom_call.1} parent=23 // pred_fallthru
          _
      $region24: #{tpu_custom_call.1} parent=5 // pred_fallthru
        _
      %p380 = scmp.le.s32.totalorder 2, %s15
      // Predicated region
      $region41: #{tpu_custom_call.1} parent=5 // pred_check
        %p381 = pneg %p380
      $region42: #{tpu_custom_call.1} parent=5 // pred_check_branch
        %383 = sbr.rel (%p381) target = $region44
      $region43: #{tpu_custom_call.1} parent=5 // pred_region
        %s384 = ssub.s32 %s15, 2
        // Predicated region
        $region45: #{tpu_custom_call.1} parent=43 // pred_check
          %p385 = pneg %p84
        $region46: #{tpu_custom_call.1} parent=43 // pred_check_branch
          %387 = sbr.rel (%p385) target = $region48
        $region47: #{tpu_custom_call.1} parent=43 // pred_region
          %s388 = sand.u32 %s69, 1
          %s389 = scalar_lea.sflag [#allocation4], %s388
          %s390 = sand.u32 %s69, 1
          %s391 = smul.addr %s390, 8
          %s392 = scalar_lea.vmem [#allocation5], %s391
          %394 = dma.done %s389, 128
        $region48: #{tpu_custom_call.1} parent=43 // pred_fallthru
          _
        // Predicated region
        $region49: #{tpu_custom_call.1} parent=43 // pred_check
          %p395 = pneg %p110
        $region50: #{tpu_custom_call.1} parent=43 // pred_check_branch
          %397 = sbr.rel (%p395) target = $region52
        $region51: #{tpu_custom_call.1} parent=43 // pred_region
          %p398 = scmp.lt.s32.totalorder %s26, 1
          %s399 = scalar_select %p398, %s26, 1
          %s400 = smul.addr %s399, 8
          %s401 = scalar_lea.vmem %s2, %s400
        $region52: #{tpu_custom_call.1} parent=43 // pred_fallthru
          _
      $region44: #{tpu_custom_call.1} parent=5 // pred_fallthru
        _
    $region6: #{tpu_custom_call.1} parent=1 // loop_footer
      %s19 = sadd.s32 1, %s15
    $region7: #{tpu_custom_call.1} parent=1 // loop_footer_branch
      %14 = sbr.rel target = $region3
    $region8: #{tpu_custom_call.1} parent=1 // loop_exit
      _
    %402 = vsyncpa [#allocation3], 1
    %s403 = scalar_lea.sflag [#allocation3], 1
    %404 = vsyncpa %s403, 1
    %405 = vsyncpa [#allocation4], 1
    %s406 = scalar_lea.sflag [#allocation4], 1
    %407 = vsyncpa %s406, 1

</llo_original>
